<compile_context>
chip_gen: v6e
topology: v6e:2x2x1
jax: 0.10.0
libtpu: 0.0.40
codegen_flags: <defaults>
</compile_context>

<pallas_src>
import jax
import jax.numpy as jnp
from jax.experimental import pallas as pl

EPS = 1e-5
LANE = 128


def _round_up(d, m=LANE):
    return ((d + m - 1) // m) * m


def _full_spec(shape):
    # whole-array VMEM block (no grid; everything fits in one tile)
    return pl.BlockSpec(shape, lambda: (0,) * len(shape))


# --------------------------------------------------------------------------
# Fused Pallas kernel (entire encoder forward)
# --------------------------------------------------------------------------
def _make_encoder_kernel(n_layers):
    """Kernel body for the whole encoder.

    Ref order: x, w_0..w_{n-1} (bf16, pre-transposed (din_p, dout_p)),
    vecs (3*n_layers, Wmax) f32 with rows [bias, gamma, beta] per layer, out.
    All activations are (batch, 128k) lane-dense tiles resident in VMEM.
    """

    def kernel(*refs):
        x_ref = refs[0]
        w_refs = refs[1:1 + n_layers]
        vec_ref = refs[1 + n_layers]
        o_ref = refs[2 + n_layers]

        x = x_ref[...]                                       # (B, Dp) fp32
        vall = vec_ref[...]                                  # (3n, Wmax) fp32

        # hidden layers: Linear -> ReLU -> BatchNorm1d
        for i in range(n_layers - 1):
            w = w_refs[i][...]                               # (din_p, dout_p) bf16
            dout_p = w.shape[1]
            b = vall[3 * i:3 * i + 1, :dout_p]
            g = vall[3 * i + 1:3 * i + 2, :dout_p]
            be = vall[3 * i + 2:3 * i + 3, :dout_p]
            # MXU: bf16 x bf16 -> fp32 accumulate
            y = jnp.dot(x.astype(jnp.bfloat16), w,
                        preferred_element_type=jnp.float32) + b
            y = jnp.maximum(y, 0.0)                          # ReLU (VPU, fp32)
            # BatchNorm1d, training-mode batch stats (biased variance)
            mean = jnp.mean(y, axis=0, keepdims=True)
            d = y - mean
            var = jnp.mean(d * d, axis=0, keepdims=True)
            x = d * (g * jax.lax.rsqrt(var + EPS)) + be      # fold gamma into scale

        # final layer: BatchNorm1d -> Linear
        i = n_layers - 1
        w = w_refs[i][...]
        din_p, dout_p = w.shape
        b = vall[3 * i:3 * i + 1, :dout_p]
        g = vall[3 * i + 1:3 * i + 2, :din_p]
        be = vall[3 * i + 2:3 * i + 3, :din_p]
        mean = jnp.mean(x, axis=0, keepdims=True)
        d = x - mean
        var = jnp.mean(d * d, axis=0, keepdims=True)
        xn = d * (g * jax.lax.rsqrt(var + EPS)) + be
        o_ref[...] = jnp.dot(xn.astype(jnp.bfloat16), w,
                             preferred_element_type=jnp.float32) + b

    return kernel


# --------------------------------------------------------------------------
# Parameter init (mimics PyTorch init_encoder semantics)
# --------------------------------------------------------------------------
def init_params(key, layer_sizes, input_size, output_size):
    sizes = [input_size] + list(layer_sizes) + [output_size]
    n = len(sizes) - 1
    params = []
    for l_id in range(n):
        din, dout = sizes[l_id], sizes[l_id + 1]
        key, kw, kb = jax.random.split(key, 3)
        # kaiming_normal_ (fan_in, relu gain): std = sqrt(2 / fan_in)
        w = jax.random.normal(kw, (dout, din), jnp.float32) * jnp.sqrt(2.0 / din)
        # PyTorch Linear default bias init: U(-1/sqrt(fan_in), 1/sqrt(fan_in))
        bound = 1.0 / jnp.sqrt(din)
        b = jax.random.uniform(kb, (dout,), jnp.float32, -bound, bound)
        bn_dim = din if l_id == n - 1 else dout   # last layer: BN over inputs
        params.append(dict(
            w=w, b=b,
            gamma=jnp.ones((bn_dim,), jnp.float32),
            beta=jnp.zeros((bn_dim,), jnp.float32),
        ))
    return params


# --------------------------------------------------------------------------
# One-time preparation: pad + transpose + bf16 weights, stack small vectors
# --------------------------------------------------------------------------
def prepare_params(params):
    n = len(params)
    weights = []
    rows = []
    for i, p in enumerate(params):
        dout, din = p["w"].shape
        din_p, dout_p = _round_up(din), _round_up(dout)
        wt = jnp.pad(p["w"].T, ((0, din_p - din), (0, dout_p - dout)))
        weights.append(wt.astype(jnp.bfloat16))   # (din_p, dout_p), bf16 for MXU
        rows.extend([p["b"], p["gamma"], p["beta"]])
    wmax = max(_round_up(r.shape[0]) for r in rows)
    vecs = jnp.stack(
        [jnp.pad(jnp.asarray(r, jnp.float32), (0, wmax - r.shape[0])) for r in rows],
        axis=0)                                    # (3n, Wmax) f32
    return dict(weights=tuple(weights), vecs=vecs,
                in_dim=params[0]["w"].shape[1],
                out_dim=params[-1]["w"].shape[0])


# --------------------------------------------------------------------------
# Encoder forward: single fused pallas_call, jitted end-to-end
# --------------------------------------------------------------------------
def make_encoder_forward(params):
    prep = prepare_params(params)
    weights, vecs = prep["weights"], prep["vecs"]
    in_dim, out_dim = prep["in_dim"], prep["out_dim"]
    n = len(weights)
    din0_p = weights[0].shape[0]
    out_p = weights[-1].shape[1]
    kernel = _make_encoder_kernel(n)

    @jax.jit
    def forward(x):
        batch = x.shape[0]
        xp = jnp.pad(x, ((0, 0), (0, din0_p - in_dim)))       # zero-pad to 128 lanes
        args = (xp,) + weights + (vecs,)
        out = pl.pallas_call(
            kernel,
            out_shape=jax.ShapeDtypeStruct((batch, out_p), jnp.float32),
            in_specs=[_full_spec(a.shape) for a in args],
            out_specs=_full_spec((batch, out_p)),
        )(*args)
        return out[:, :out_dim]

    return forward


# Pure-JAX reference (same math: bf16 matmul operands, fp32 accumulate/BN)
def encoder_forward_ref(params, x):
    n = len(params)
    for i, p in enumerate(params):
        wt = p["w"].T.astype(jnp.bfloat16)
        b = p["b"][None, :]
        if i == n - 1:
            mean = jnp.mean(x, axis=0, keepdims=True)
            d = x - mean
            var = jnp.mean(d * d, axis=0, keepdims=True)
            xhat = d * (p["gamma"][None, :] * jax.lax.rsqrt(var + EPS)) + p["beta"][None, :]
            x = jnp.dot(xhat.astype(jnp.bfloat16), wt,
                        preferred_element_type=jnp.float32) + b
        else:
            y = jnp.dot(x.astype(jnp.bfloat16), wt,
                        preferred_element_type=jnp.float32) + b
            y = jnp.maximum(y, 0.0)
            mean = jnp.mean(y, axis=0, keepdims=True)
            d = y - mean
            var = jnp.mean(d * d, axis=0, keepdims=True)
            x = d * (p["gamma"][None, :] * jax.lax.rsqrt(var + EPS)) + p["beta"][None, :]
    return x


if __name__ == "__main__":
    # Config consistent with the module: Encoder([64, 48], input_size=32, output_size=16)
    # Batch = 128 rows (multiple of 8 sublanes, fills MXU rows per perf review).
    batch = 128
    input_size, layer_sizes, output_size = 32, [64, 48], 16

    key = jax.random.PRNGKey(0)
    key, kx = jax.random.split(key)
    x = jax.random.normal(kx, (batch, input_size), jnp.float32)

    params = init_params(key, layer_sizes, input_size, output_size)
    forward = make_encoder_forward(params)          # pads/prepares weights ONCE

    out = jax.block_until_ready(forward(x))
    ref = encoder_forward_ref(params, x)

    assert out.shape == (batch, output_size)
    assert jnp.allclose(out, ref, atol=2e-3, rtol=2e-3), "mismatch vs reference"

    print("KERNEL_OK")
</pallas_src>

<mosaic_0001>
module attributes {stable_mosaic.version = 11 : i64} {
  func.func @kernel(%arg0: memref<128x128xf32, #tpu.memory_space<vmem>>, %arg1: memref<128x128xbf16, #tpu.memory_space<vmem>>, %arg2: memref<128x128xbf16, #tpu.memory_space<vmem>>, %arg3: memref<128x128xbf16, #tpu.memory_space<vmem>>, %arg4: memref<9x128xf32, #tpu.memory_space<vmem>>, %arg5: memref<128x128xf32, #tpu.memory_space<vmem>>) attributes {dimension_semantics = [], scalar_prefetch = 0 : i64, scratch_operands = 0 : i64, tpu.core_type = #tpu.core_type<tc>} {
    %c0 = arith.constant 0 : index
    %c0_0 = arith.constant 0 : index
    %0 = vector.load %arg0[%c0, %c0_0] : memref<128x128xf32, #tpu.memory_space<vmem>>, vector<128x128xf32>
    %c0_1 = arith.constant 0 : index
    %c0_2 = arith.constant 0 : index
    %1 = vector.load %arg4[%c0_1, %c0_2] : memref<9x128xf32, #tpu.memory_space<vmem>>, vector<9x128xf32>
    %c0_3 = arith.constant 0 : index
    %c0_4 = arith.constant 0 : index
    %2 = vector.load %arg1[%c0_3, %c0_4] : memref<128x128xbf16, #tpu.memory_space<vmem>>, vector<128x128xbf16>
    %3 = vector.extract_strided_slice %1 {offsets = [0, 0], sizes = [1, 128], strides = [1, 1]} : vector<9x128xf32> to vector<1x128xf32>
    %4 = vector.extract_strided_slice %1 {offsets = [1, 0], sizes = [1, 128], strides = [1, 1]} : vector<9x128xf32> to vector<1x128xf32>
    %5 = vector.extract_strided_slice %1 {offsets = [2, 0], sizes = [1, 128], strides = [1, 1]} : vector<9x128xf32> to vector<1x128xf32>
    %6 = arith.truncf %0 : vector<128x128xf32> to vector<128x128xbf16>
    %cst = arith.constant dense<0.000000e+00> : vector<128x128xf32>
    %7 = tpu.matmul %6, %2, %cst {dimension_numbers = #tpu.dot_dimension_numbers<[1], [0], [0], [1], [0, 0, 1, 1], [], []>} : vector<128x128xbf16>, vector<128x128xbf16>, vector<128x128xf32> -> vector<128x128xf32>
    %8 = vector.broadcast %3 : vector<1x128xf32> to vector<128x128xf32>
    %9 = arith.addf %7, %8 : vector<128x128xf32>
    %cst_5 = arith.constant 0.000000e+00 : f32
    %10 = vector.broadcast %cst_5 : f32 to vector<128x128xf32>
    %11 = arith.maximumf %9, %10 : vector<128x128xf32>
    %cst_6 = arith.constant dense<0.000000e+00> : vector<128xf32>
    %12 = vector.multi_reduction <add>, %11, %cst_6 [0] : vector<128x128xf32> to vector<128xf32>
    %13 = vector.shape_cast %12 : vector<128xf32> to vector<1x128xf32>
    %cst_7 = arith.constant 1.280000e+02 : f32
    %14 = vector.broadcast %cst_7 : f32 to vector<1x128xf32>
    %15 = arith.divf %13, %14 : vector<1x128xf32>
    %16 = vector.broadcast %15 : vector<1x128xf32> to vector<128x128xf32>
    %17 = arith.subf %11, %16 : vector<128x128xf32>
    %18 = arith.mulf %17, %17 : vector<128x128xf32>
    %cst_8 = arith.constant dense<0.000000e+00> : vector<128xf32>
    %19 = vector.multi_reduction <add>, %18, %cst_8 [0] : vector<128x128xf32> to vector<128xf32>
    %20 = vector.shape_cast %19 : vector<128xf32> to vector<1x128xf32>
    %cst_9 = arith.constant 1.280000e+02 : f32
    %21 = vector.broadcast %cst_9 : f32 to vector<1x128xf32>
    %22 = arith.divf %20, %21 : vector<1x128xf32>
    %cst_10 = arith.constant 9.99999974E-6 : f32
    %23 = vector.broadcast %cst_10 : f32 to vector<1x128xf32>
    %24 = arith.addf %22, %23 : vector<1x128xf32>
    %25 = math.rsqrt %24 : vector<1x128xf32>
    %26 = arith.mulf %4, %25 : vector<1x128xf32>
    %27 = vector.broadcast %26 : vector<1x128xf32> to vector<128x128xf32>
    %28 = arith.mulf %17, %27 : vector<128x128xf32>
    %29 = vector.broadcast %5 : vector<1x128xf32> to vector<128x128xf32>
    %30 = arith.addf %28, %29 : vector<128x128xf32>
    %c0_11 = arith.constant 0 : index
    %c0_12 = arith.constant 0 : index
    %31 = vector.load %arg2[%c0_11, %c0_12] : memref<128x128xbf16, #tpu.memory_space<vmem>>, vector<128x128xbf16>
    %32 = vector.extract_strided_slice %1 {offsets = [3, 0], sizes = [1, 128], strides = [1, 1]} : vector<9x128xf32> to vector<1x128xf32>
    %33 = vector.extract_strided_slice %1 {offsets = [4, 0], sizes = [1, 128], strides = [1, 1]} : vector<9x128xf32> to vector<1x128xf32>
    %34 = vector.extract_strided_slice %1 {offsets = [5, 0], sizes = [1, 128], strides = [1, 1]} : vector<9x128xf32> to vector<1x128xf32>
    %35 = arith.truncf %30 : vector<128x128xf32> to vector<128x128xbf16>
    %cst_13 = arith.constant dense<0.000000e+00> : vector<128x128xf32>
    %36 = tpu.matmul %35, %31, %cst_13 {dimension_numbers = #tpu.dot_dimension_numbers<[1], [0], [0], [1], [0, 0, 1, 1], [], []>} : vector<128x128xbf16>, vector<128x128xbf16>, vector<128x128xf32> -> vector<128x128xf32>
    %37 = vector.broadcast %32 : vector<1x128xf32> to vector<128x128xf32>
    %38 = arith.addf %36, %37 : vector<128x128xf32>
    %cst_14 = arith.constant 0.000000e+00 : f32
    %39 = vector.broadcast %cst_14 : f32 to vector<128x128xf32>
    %40 = arith.maximumf %38, %39 : vector<128x128xf32>
    %cst_15 = arith.constant dense<0.000000e+00> : vector<128xf32>
    %41 = vector.multi_reduction <add>, %40, %cst_15 [0] : vector<128x128xf32> to vector<128xf32>
    %42 = vector.shape_cast %41 : vector<128xf32> to vector<1x128xf32>
    %cst_16 = arith.constant 1.280000e+02 : f32
    %43 = vector.broadcast %cst_16 : f32 to vector<1x128xf32>
    %44 = arith.divf %42, %43 : vector<1x128xf32>
    %45 = vector.broadcast %44 : vector<1x128xf32> to vector<128x128xf32>
    %46 = arith.subf %40, %45 : vector<128x128xf32>
    %47 = arith.mulf %46, %46 : vector<128x128xf32>
    %cst_17 = arith.constant dense<0.000000e+00> : vector<128xf32>
    %48 = vector.multi_reduction <add>, %47, %cst_17 [0] : vector<128x128xf32> to vector<128xf32>
    %49 = vector.shape_cast %48 : vector<128xf32> to vector<1x128xf32>
    %cst_18 = arith.constant 1.280000e+02 : f32
    %50 = vector.broadcast %cst_18 : f32 to vector<1x128xf32>
    %51 = arith.divf %49, %50 : vector<1x128xf32>
    %cst_19 = arith.constant 9.99999974E-6 : f32
    %52 = vector.broadcast %cst_19 : f32 to vector<1x128xf32>
    %53 = arith.addf %51, %52 : vector<1x128xf32>
    %54 = math.rsqrt %53 : vector<1x128xf32>
    %55 = arith.mulf %33, %54 : vector<1x128xf32>
    %56 = vector.broadcast %55 : vector<1x128xf32> to vector<128x128xf32>
    %57 = arith.mulf %46, %56 : vector<128x128xf32>
    %58 = vector.broadcast %34 : vector<1x128xf32> to vector<128x128xf32>
    %59 = arith.addf %57, %58 : vector<128x128xf32>
    %c0_20 = arith.constant 0 : index
    %c0_21 = arith.constant 0 : index
    %60 = vector.load %arg3[%c0_20, %c0_21] : memref<128x128xbf16, #tpu.memory_space<vmem>>, vector<128x128xbf16>
    %61 = vector.extract_strided_slice %1 {offsets = [6, 0], sizes = [1, 128], strides = [1, 1]} : vector<9x128xf32> to vector<1x128xf32>
    %62 = vector.extract_strided_slice %1 {offsets = [7, 0], sizes = [1, 128], strides = [1, 1]} : vector<9x128xf32> to vector<1x128xf32>
    %63 = vector.extract_strided_slice %1 {offsets = [8, 0], sizes = [1, 128], strides = [1, 1]} : vector<9x128xf32> to vector<1x128xf32>
    %cst_22 = arith.constant dense<0.000000e+00> : vector<128xf32>
    %64 = vector.multi_reduction <add>, %59, %cst_22 [0] : vector<128x128xf32> to vector<128xf32>
    %65 = vector.shape_cast %64 : vector<128xf32> to vector<1x128xf32>
    %cst_23 = arith.constant 1.280000e+02 : f32
    %66 = vector.broadcast %cst_23 : f32 to vector<1x128xf32>
    %67 = arith.divf %65, %66 : vector<1x128xf32>
    %68 = vector.broadcast %67 : vector<1x128xf32> to vector<128x128xf32>
    %69 = arith.subf %59, %68 : vector<128x128xf32>
    %70 = arith.mulf %69, %69 : vector<128x128xf32>
    %cst_24 = arith.constant dense<0.000000e+00> : vector<128xf32>
    %71 = vector.multi_reduction <add>, %70, %cst_24 [0] : vector<128x128xf32> to vector<128xf32>
    %72 = vector.shape_cast %71 : vector<128xf32> to vector<1x128xf32>
    %cst_25 = arith.constant 1.280000e+02 : f32
    %73 = vector.broadcast %cst_25 : f32 to vector<1x128xf32>
    %74 = arith.divf %72, %73 : vector<1x128xf32>
    %cst_26 = arith.constant 9.99999974E-6 : f32
    %75 = vector.broadcast %cst_26 : f32 to vector<1x128xf32>
    %76 = arith.addf %74, %75 : vector<1x128xf32>
    %77 = math.rsqrt %76 : vector<1x128xf32>
    %78 = arith.mulf %62, %77 : vector<1x128xf32>
    %79 = vector.broadcast %78 : vector<1x128xf32> to vector<128x128xf32>
    %80 = arith.mulf %69, %79 : vector<128x128xf32>
    %81 = vector.broadcast %63 : vector<1x128xf32> to vector<128x128xf32>
    %82 = arith.addf %80, %81 : vector<128x128xf32>
    %83 = arith.truncf %82 : vector<128x128xf32> to vector<128x128xbf16>
    %cst_27 = arith.constant dense<0.000000e+00> : vector<128x128xf32>
    %84 = tpu.matmul %83, %60, %cst_27 {dimension_numbers = #tpu.dot_dimension_numbers<[1], [0], [0], [1], [0, 0, 1, 1], [], []>} : vector<128x128xbf16>, vector<128x128xbf16>, vector<128x128xf32> -> vector<128x128xf32>
    %85 = vector.broadcast %61 : vector<1x128xf32> to vector<128x128xf32>
    %86 = arith.addf %84, %85 : vector<128x128xf32>
    %c0_28 = arith.constant 0 : index
    %c0_29 = arith.constant 0 : index
    %87 = vector.load %arg5[%c0_28, %c0_29] : memref<128x128xf32, #tpu.memory_space<vmem>>, vector<128x128xf32>
    tpu.vector_store %arg5[%c0_28, %c0_29], %86 {strides = array<i32>} : memref<128x128xf32, #tpu.memory_space<vmem>>, vector<128x128xf32>,
    return
  }
}

</mosaic_0001>

<llo_original>
// kernel: forward.1
$region0: #{forward.1}
  #allocation0 [shape = 'u32[]', space=smem, size = 0x4, offset = 0x4, fixed_abs, tag = 'smem constant byte address 0x4 - core index']
  #allocation1 [shape = 'u32[144,128]{1,0:T(1,128)}', space=vmem, size = 0x12000, scoped, tag = 'internal scratch']
  %s0 = inlined_call_operand.vmem [shape: f32[128,128], index: 0, kind: input, shape index: {}]
  %s1 = inlined_call_operand.vmem [shape: bf16[128,128], index: 1, kind: input, shape index: {}]
  %s2 = inlined_call_operand.vmem [shape: bf16[128,128], index: 2, kind: input, shape index: {}]
  %s3 = inlined_call_operand.vmem [shape: bf16[128,128], index: 3, kind: input, shape index: {}]
  %s4 = inlined_call_operand.vmem [shape: f32[9,128], index: 4, kind: input, shape index: {}]
  %s5 = inlined_call_operand.vmem [shape: f32[128,128], index: 5, kind: output, shape index: {}]
  %s6 = sld [smem:[#allocation0]]
  $region30: #{forward.1} parent=0
    _
  %s8 = ssub.s32 1, %s6
  %s9 = scalar_select 0, %s8, %s6
  // Predicated region
  $region2: #{forward.1} parent=0 // pred_check
    _
  $region3: #{forward.1} parent=0 // pred_check_branch
    %11 = sbr.rel (0) target = $region5
  $region4: #{forward.1} parent=0 // pred_region
    _
  $region5: #{forward.1} parent=0 // pred_fallthru
    _
  // Predicated region
  $region6: #{forward.1} parent=0 // pred_check
    _
  $region7: #{forward.1} parent=0 // pred_check_branch
    %13 = sbr.rel (0) target = $region9
  $region8: #{forward.1} parent=0 // pred_region
    _
  $region9: #{forward.1} parent=0 // pred_fallthru
    _
  // Predicated region
  $region10: #{forward.1} parent=0 // pred_check
    _
  $region11: #{forward.1} parent=0 // pred_check_branch
    %15 = sbr.rel (0) target = $region13
  $region12: #{forward.1} parent=0 // pred_region
    _
  $region13: #{forward.1} parent=0 // pred_fallthru
    _
  // Predicated region
  $region14: #{forward.1} parent=0 // pred_check
    _
  $region15: #{forward.1} parent=0 // pred_check_branch
    %17 = sbr.rel (0) target = $region17
  $region16: #{forward.1} parent=0 // pred_region
    _
  $region17: #{forward.1} parent=0 // pred_fallthru
    _
  // Predicated region
  $region18: #{forward.1} parent=0 // pred_check
    _
  $region19: #{forward.1} parent=0 // pred_check_branch
    %19 = sbr.rel (0) target = $region21
  $region20: #{forward.1} parent=0 // pred_region
    _
  $region21: #{forward.1} parent=0 // pred_fallthru
    _
  %v21 = vld [vmem:[%s0] sm:$0xff]
  %v22 = vld [vmem:[%s0 + $0x8] sm:$0xff]
  %v23 = vld [vmem:[%s0 + $0x10] sm:$0xff]
  %v24 = vld [vmem:[%s0 + $0x18] sm:$0xff]
  %v25 = vld [vmem:[%s0 + $0x20] sm:$0xff]
  %v26 = vld [vmem:[%s0 + $0x28] sm:$0xff]
  %v27 = vld [vmem:[%s0 + $0x30] sm:$0xff]
  %v28 = vld [vmem:[%s0 + $0x38] sm:$0xff]
  %v29 = vld [vmem:[%s0 + $0x40] sm:$0xff]
  %v30 = vld [vmem:[%s0 + $0x48] sm:$0xff]
  %v31 = vld [vmem:[%s0 + $0x50] sm:$0xff]
  %v32 = vld [vmem:[%s0 + $0x58] sm:$0xff]
  %v33 = vld [vmem:[%s0 + $0x60] sm:$0xff]
  %v34 = vld [vmem:[%s0 + $0x68] sm:$0xff]
  %v35 = vld [vmem:[%s0 + $0x70] sm:$0xff]
  %v36 = vld [vmem:[%s0 + $0x78] sm:$0xff]
  %v37 = vld [vmem:[%s4] sm:$0xff]
  %v38 = vld [vmem:[%s4 + $0x8] sm:$0x1]
  %v39 = vld [vmem:[%s1] sm:$0xf]
  %v40 = vld [vmem:[%s1 + $0x4] sm:$0xf]
  %v41 = vld [vmem:[%s1 + $0x8] sm:$0xf]
  %v42 = vld [vmem:[%s1 + $0xc] sm:$0xf]
  %v43 = vld [vmem:[%s1 + $0x10] sm:$0xf]
  %v44 = vld [vmem:[%s1 + $0x14] sm:$0xf]
  %v45 = vld [vmem:[%s1 + $0x18] sm:$0xf]
  %v46 = vld [vmem:[%s1 + $0x1c] sm:$0xf]
  %v47 = vld [vmem:[%s1 + $0x20] sm:$0xf]
  %v48 = vld [vmem:[%s1 + $0x24] sm:$0xf]
  %v49 = vld [vmem:[%s1 + $0x28] sm:$0xf]
  %v50 = vld [vmem:[%s1 + $0x2c] sm:$0xf]
  %v51 = vld [vmem:[%s1 + $0x30] sm:$0xf]
  %v52 = vld [vmem:[%s1 + $0x34] sm:$0xf]
  %v53 = vld [vmem:[%s1 + $0x38] sm:$0xf]
  %v54 = vld [vmem:[%s1 + $0x3c] sm:$0xf]
  %v55 = vpack.c.bf16 %v22, %v21
  %v56 = vpack.c.bf16 %v24, %v23
  %v57 = vpack.c.bf16 %v26, %v25
  %v58 = vpack.c.bf16 %v28, %v27
  %v59 = vpack.c.bf16 %v30, %v29
  %v60 = vpack.c.bf16 %v32, %v31
  %v61 = vpack.c.bf16 %v34, %v33
  %v62 = vpack.c.bf16 %v36, %v35
  %v63 = vlaneseq
  %v64 = vshrl.u32 %v63, 7
  %v65 = vsub.s32 0, %v64
  %v66 = vrot.slane %v37, %v65
  %v83 = vunpack.c.l.b16 %v39
  %v84 = vunpack.c.l.b16 %v40
  %v85 = vunpack.c.l.b16 %v41
  %v86 = vunpack.c.l.b16 %v42
  %v87 = vunpack.c.l.b16 %v43
  %v88 = vunpack.c.l.b16 %v44
  %v89 = vunpack.c.l.b16 %v45
  %v90 = vunpack.c.l.b16 %v46
  %v91 = vunpack.c.l.b16 %v47
  %v92 = vunpack.c.l.b16 %v48
  %v93 = vunpack.c.l.b16 %v49
  %v94 = vunpack.c.l.b16 %v50
  %v95 = vunpack.c.l.b16 %v51
  %v96 = vunpack.c.l.b16 %v52
  %v97 = vunpack.c.l.b16 %v53
  %v98 = vunpack.c.l.b16 %v54
  %v99 = vpack.c.b16 %v84, %v83
  %v100 = vpack.c.b16 %v86, %v85
  %v101 = vpack.c.b16 %v88, %v87
  %v102 = vpack.c.b16 %v90, %v89
  %v103 = vpack.c.b16 %v92, %v91
  %v104 = vpack.c.b16 %v94, %v93
  %v105 = vpack.c.b16 %v96, %v95
  %v106 = vpack.c.b16 %v98, %v97
  %115 = vmatprep.subr.bf16.mxu0 0
  %116 = vmatpush1.bf16.msra.mxu0 %v106
  %117 = vmatprep.subr.bf16.mxu0 0
  %118 = vmatpush1.bf16.msra.mxu0 %v105
  %119 = vmatprep.subr.bf16.mxu0 0
  %120 = vmatpush1.bf16.msra.mxu0 %v104
  %121 = vmatprep.subr.bf16.mxu0 0
  %122 = vmatpush1.bf16.msra.mxu0 %v103
  %123 = vmatprep.subr.bf16.mxu0 0
  %124 = vmatpush1.bf16.msra.mxu0 %v102
  %125 = vmatprep.subr.bf16.mxu0 0
  %126 = vmatpush1.bf16.msra.mxu0 %v101
  %127 = vmatprep.subr.bf16.mxu0 0
  %128 = vmatpush1.bf16.msra.mxu0 %v100
  %129 = vmatprep.subr.bf16.mxu0 0
  %130 = vmatpush1.bf16.msra.mxu0 %v99
  %131 = vmatprep.subr.bf16.mxu0 0
  %132 = vmatpush2.bf16.msra.mxu0 0
  %133 = vmatprep.subr.bf16.mxu0 0
  %134 = vmatpush2.bf16.msra.mxu0 0
  %135 = vmatprep.subr.bf16.mxu0 0
  %136 = vmatpush2.bf16.msra.mxu0 0
  %137 = vmatprep.subr.bf16.mxu0 0
  %138 = vmatpush2.bf16.msra.mxu0 0
  %139 = vmatprep.subr.bf16.mxu0 0
  %140 = vmatpush2.bf16.msra.mxu0 0
  %141 = vmatprep.subr.bf16.mxu0 0
  %142 = vmatpush2.bf16.msra.mxu0 0
  %143 = vmatprep.subr.bf16.mxu0 0
  %144 = vmatpush2.bf16.msra.mxu0 0
  %145 = vmatprep.subr.bf16.mxu0 0
  %146 = vmatpush2.bf16.msra.mxu0 0
  %147 = vmatprep.mubr.bf16.mxu0 0
  %148 = vmatmul.mubr.bf16.gmra.mxu0 %v55
  %v149 = vpop.f32.mrf.mxu0
  %v150 = vadd.f32 %v66, %v149
  %v151 = vpop.f32.mrf.mxu0
  %v152 = vpop.f32.mrf.mxu0
  %v153 = vadd.f32 %v66, %v152
  %v154 = vpop.f32.mrf.mxu0
  %155 = vmatprep.mubr.bf16.mxu0 0
  %156 = vmatmul.mubr.bf16.gmra.mxu0 %v56
  %v157 = vpop.f32.mrf.mxu0
  %v158 = vadd.f32 %v66, %v157
  %v159 = vpop.f32.mrf.mxu0
  %v160 = vpop.f32.mrf.mxu0
  %v161 = vadd.f32 %v66, %v160
  %v162 = vpop.f32.mrf.mxu0
  %163 = vmatprep.mubr.bf16.mxu0 0
  %164 = vmatmul.mubr.bf16.gmra.mxu0 %v57
  %v165 = vpop.f32.mrf.mxu0
  %v166 = vadd.f32 %v66, %v165
  %v167 = vpop.f32.mrf.mxu0
  %v168 = vpop.f32.mrf.mxu0
  %v169 = vadd.f32 %v66, %v168
  %v170 = vpop.f32.mrf.mxu0
  %171 = vmatprep.mubr.bf16.mxu0 0
  %172 = vmatmul.mubr.bf16.gmra.mxu0 %v58
  %v173 = vpop.f32.mrf.mxu0
  %v174 = vadd.f32 %v66, %v173
  %v175 = vpop.f32.mrf.mxu0
  %v176 = vpop.f32.mrf.mxu0
  %v177 = vadd.f32 %v66, %v176
  %v178 = vpop.f32.mrf.mxu0
  %179 = vmatprep.mubr.bf16.mxu0 0
  %180 = vmatmul.mubr.bf16.gmra.mxu0 %v59
  %v181 = vpop.f32.mrf.mxu0
  %v182 = vadd.f32 %v66, %v181
  %v183 = vpop.f32.mrf.mxu0
  %v184 = vpop.f32.mrf.mxu0
  %v185 = vadd.f32 %v66, %v184
  %v186 = vpop.f32.mrf.mxu0
  %187 = vmatprep.mubr.bf16.mxu0 0
  %188 = vmatmul.mubr.bf16.gmra.mxu0 %v60
  %v189 = vpop.f32.mrf.mxu0
  %v190 = vadd.f32 %v66, %v189
  %v191 = vpop.f32.mrf.mxu0
  %v192 = vpop.f32.mrf.mxu0
  %v193 = vadd.f32 %v66, %v192
  %v194 = vpop.f32.mrf.mxu0
  %195 = vmatprep.mubr.bf16.mxu0 0
  %196 = vmatmul.mubr.bf16.gmra.mxu0 %v61
  %v197 = vpop.f32.mrf.mxu0
  %v198 = vadd.f32 %v66, %v197
  %v199 = vpop.f32.mrf.mxu0
  %v200 = vpop.f32.mrf.mxu0
  %v201 = vadd.f32 %v66, %v200
  %v202 = vpop.f32.mrf.mxu0
  %203 = vmatprep.mubr.bf16.mxu0 0
  %204 = vmatmul.mubr.bf16.gmra.mxu0 %v62
  %v205 = vpop.f32.mrf.mxu0
  %v206 = vadd.f32 %v66, %v205
  %v207 = vpop.f32.mrf.mxu0
  %v208 = vpop.f32.mrf.mxu0
  %v209 = vadd.f32 %v66, %v208
  %v210 = vpop.f32.mrf.mxu0
  %211 = vdwg.mxu0
  %v212 = vmax.f32 %v150, 0.0
  %v213 = vmax.f32 %v153, 0.0
  %v214 = vmax.f32 %v158, 0.0
  %v215 = vmax.f32 %v161, 0.0
  %v216 = vmax.f32 %v166, 0.0
  %v217 = vmax.f32 %v169, 0.0
  %v218 = vmax.f32 %v174, 0.0
  %v219 = vmax.f32 %v177, 0.0
  %v220 = vmax.f32 %v182, 0.0
  %v221 = vmax.f32 %v185, 0.0
  %v222 = vmax.f32 %v190, 0.0
  %v223 = vmax.f32 %v193, 0.0
  %v224 = vmax.f32 %v198, 0.0
  %v225 = vmax.f32 %v201, 0.0
  %v226 = vmax.f32 %v206, 0.0
  %v227 = vmax.f32 %v209, 0.0
  %v228 = vadd.f32 %v212, %v213
  %v229 = vadd.f32 %v228, %v214
  %v230 = vadd.f32 %v229, %v215
  %v231 = vadd.f32 %v230, %v216
  %v232 = vadd.f32 %v231, %v217
  %v233 = vadd.f32 %v232, %v218
  %v234 = vadd.f32 %v233, %v219
  %v235 = vadd.f32 %v234, %v220
  %v236 = vadd.f32 %v235, %v221
  %v237 = vadd.f32 %v236, %v222
  %v238 = vadd.f32 %v237, %v223
  %v239 = vadd.f32 %v238, %v224
  %v240 = vadd.f32 %v239, %v225
  %v241 = vadd.f32 %v240, %v226
  %v242 = vadd.f32 %v241, %v227
  %v243 = vrot.slane %v242, 4
  %v244 = vadd.f32 %v242, %v243
  %v245 = vrot.slane %v244, 2
  %v246 = vadd.f32 %v244, %v245
  %v247 = vrot.slane %v246, 1
  %v248 = vadd.f32 %v246, %v247
  %v249 = vrcp.pop 128.0
  %v250 = vmul.f32 %v248, %v249
  %v251 = vsub.f32 %v212, %v250
  %v252 = vsub.f32 %v213, %v250
  %v253 = vsub.f32 %v214, %v250
  %v254 = vsub.f32 %v215, %v250
  %v255 = vsub.f32 %v216, %v250
  %v256 = vsub.f32 %v217, %v250
  %v257 = vsub.f32 %v218, %v250
  %v258 = vsub.f32 %v219, %v250
  %v259 = vsub.f32 %v220, %v250
  %v260 = vsub.f32 %v221, %v250
  %v261 = vsub.f32 %v222, %v250
  %v262 = vsub.f32 %v223, %v250
  %v263 = vsub.f32 %v224, %v250
  %v264 = vsub.f32 %v225, %v250
  %v265 = vsub.f32 %v226, %v250
  %v266 = vsub.f32 %v227, %v250
  %v267 = vmul.f32 %v251, %v251
  %v268 = vmul.f32 %v252, %v252
  %v269 = vmul.f32 %v253, %v253
  %v270 = vmul.f32 %v254, %v254
  %v271 = vmul.f32 %v255, %v255
  %v272 = vmul.f32 %v256, %v256
  %v273 = vmul.f32 %v257, %v257
  %v274 = vmul.f32 %v258, %v258
  %v275 = vmul.f32 %v259, %v259
  %v276 = vmul.f32 %v260, %v260
  %v277 = vmul.f32 %v261, %v261
  %v278 = vmul.f32 %v262, %v262
  %v279 = vmul.f32 %v263, %v263
  %v280 = vmul.f32 %v264, %v264
  %v281 = vmul.f32 %v265, %v265
  %v282 = vmul.f32 %v266, %v266
  %v283 = vadd.f32 %v267, %v268
  %v284 = vadd.f32 %v283, %v269
  %v285 = vadd.f32 %v284, %v270
  %v286 = vadd.f32 %v285, %v271
  %v287 = vadd.f32 %v286, %v272
  %v288 = vadd.f32 %v287, %v273
  %v289 = vadd.f32 %v288, %v274
  %v290 = vadd.f32 %v289, %v275
  %v291 = vadd.f32 %v290, %v276
  %v292 = vadd.f32 %v291, %v277
  %v293 = vadd.f32 %v292, %v278
  %v294 = vadd.f32 %v293, %v279
  %v295 = vadd.f32 %v294, %v280
  %v296 = vadd.f32 %v295, %v281
  %v297 = vadd.f32 %v296, %v282
  %v298 = vrot.slane %v297, 4
  %v299 = vadd.f32 %v297, %v298
  %v300 = vrot.slane %v299, 2
  %v301 = vadd.f32 %v299, %v300
  %v302 = vrot.slane %v301, 1
  %v303 = vadd.f32 %v301, %v302
  %v304 = vmul.f32 %v303, %v249
  %v305 = vadd.f32 %v304, 1e-05
  %v306 = vrsqrt.pop %v305
  %v307 = vmul.f32 %v37, %v306
  %v308 = vlaneseq
  %v309 = vshrl.u32 %v308, 7
  %v310 = vsub.s32 1, %v309
  %v311 = vrot.slane %v307, %v310
  %v312 = vmul.f32 %v251, %v311
  %v313 = vmul.f32 %v252, %v311
  %v314 = vmul.f32 %v253, %v311
  %v315 = vmul.f32 %v254, %v311
  %v316 = vmul.f32 %v255, %v311
  %v317 = vmul.f32 %v256, %v311
  %v318 = vmul.f32 %v257, %v311
  %v319 = vmul.f32 %v258, %v311
  %v320 = vmul.f32 %v259, %v311
  %v321 = vmul.f32 %v260, %v311
  %v322 = vmul.f32 %v261, %v311
  %v323 = vmul.f32 %v262, %v311
  %v324 = vmul.f32 %v263, %v311
  %v325 = vmul.f32 %v264, %v311
  %v326 = vmul.f32 %v265, %v311
  %v327 = vmul.f32 %v266, %v311
  %v328 = vlaneseq
  %v329 = vshrl.u32 %v328, 7
  %v330 = vsub.s32 2, %v329
  %v331 = vrot.slane %v37, %v330
  %v332 = vadd.f32 %v312, %v331
  %v333 = vadd.f32 %v313, %v331
  %v334 = vadd.f32 %v314, %v331
  %v335 = vadd.f32 %v315, %v331
  %v336 = vadd.f32 %v316, %v331
  %v337 = vadd.f32 %v317, %v331
  %v338 = vadd.f32 %v318, %v331
  %v339 = vadd.f32 %v319, %v331
  %v340 = vadd.f32 %v320, %v331
  %v341 = vadd.f32 %v321, %v331
  %v342 = vadd.f32 %v322, %v331
  %v343 = vadd.f32 %v323, %v331
  %v344 = vadd.f32 %v324, %v331
  %v345 = vadd.f32 %v325, %v331
  %v346 = vadd.f32 %v326, %v331
  %v347 = vadd.f32 %v327, %v331
  %v348 = vld [vmem:[%s2] sm:$0xf]
  %v349 = vld [vmem:[%s2 + $0x4] sm:$0xf]
  %v350 = vld [vmem:[%s2 + $0x8] sm:$0xf]
  %v351 = vld [vmem:[%s2 + $0xc] sm:$0xf]
  %v352 = vld [vmem:[%s2 + $0x10] sm:$0xf]
  %v353 = vld [vmem:[%s2 + $0x14] sm:$0xf]
  %v354 = vld [vmem:[%s2 + $0x18] sm:$0xf]
  %v355 = vld [vmem:[%s2 + $0x1c] sm:$0xf]
  %v356 = vld [vmem:[%s2 + $0x20] sm:$0xf]
  %v357 = vld [vmem:[%s2 + $0x24] sm:$0xf]
  %v358 = vld [vmem:[%s2 + $0x28] sm:$0xf]
  %v359 = vld [vmem:[%s2 + $0x2c] sm:$0xf]
  %v360 = vld [vmem:[%s2 + $0x30] sm:$0xf]
  %v361 = vld [vmem:[%s2 + $0x34] sm:$0xf]
  %v362 = vld [vmem:[%s2 + $0x38] sm:$0xf]
  %v363 = vld [vmem:[%s2 + $0x3c] sm:$0xf]
  %v364 = vpack.c.bf16 %v333, %v332
  %v365 = vpack.c.bf16 %v335, %v334
  %v366 = vpack.c.bf16 %v337, %v336
  %v367 = vpack.c.bf16 %v339, %v338
  %v368 = vpack.c.bf16 %v341, %v340
  %v369 = vpack.c.bf16 %v343, %v342
  %v370 = vpack.c.bf16 %v345, %v344
  %v371 = vpack.c.bf16 %v347, %v346
  %v372 = vlaneseq
  %v373 = vshrl.u32 %v372, 7
  %v374 = vsub.s32 3, %v373
  %v375 = vrot.slane %v37, %v374
  %v392 = vunpack.c.l.b16 %v348
  %v393 = vunpack.c.l.b16 %v349
  %v394 = vunpack.c.l.b16 %v350
  %v395 = vunpack.c.l.b16 %v351
  %v396 = vunpack.c.l.b16 %v352
  %v397 = vunpack.c.l.b16 %v353
  %v398 = vunpack.c.l.b16 %v354
  %v399 = vunpack.c.l.b16 %v355
  %v400 = vunpack.c.l.b16 %v356
  %v401 = vunpack.c.l.b16 %v357
  %v402 = vunpack.c.l.b16 %v358
  %v403 = vunpack.c.l.b16 %v359
  %v404 = vunpack.c.l.b16 %v360
  %v405 = vunpack.c.l.b16 %v361
  %v406 = vunpack.c.l.b16 %v362
  %v407 = vunpack.c.l.b16 %v363
  %v408 = vpack.c.b16 %v393, %v392
  %v409 = vpack.c.b16 %v395, %v394
  %v410 = vpack.c.b16 %v397, %v396
  %v411 = vpack.c.b16 %v399, %v398
  %v412 = vpack.c.b16 %v401, %v400
  %v413 = vpack.c.b16 %v403, %v402
  %v414 = vpack.c.b16 %v405, %v404
  %v415 = vpack.c.b16 %v407, %v406
  %424 = vmatprep.subr.bf16.mxu0 0
  %425 = vmatpush1.bf16.msra.mxu0 %v415
  %426 = vmatprep.subr.bf16.mxu0 0
  %427 = vmatpush1.bf16.msra.mxu0 %v414
  %428 = vmatprep.subr.bf16.mxu0 0
  %429 = vmatpush1.bf16.msra.mxu0 %v413
  %430 = vmatprep.subr.bf16.mxu0 0
  %431 = vmatpush1.bf16.msra.mxu0 %v412
  %432 = vmatprep.subr.bf16.mxu0 0
  %433 = vmatpush1.bf16.msra.mxu0 %v411
  %434 = vmatprep.subr.bf16.mxu0 0
  %435 = vmatpush1.bf16.msra.mxu0 %v410
  %436 = vmatprep.subr.bf16.mxu0 0
  %437 = vmatpush1.bf16.msra.mxu0 %v409
  %438 = vmatprep.subr.bf16.mxu0 0
  %439 = vmatpush1.bf16.msra.mxu0 %v408
  %440 = vmatprep.subr.bf16.mxu0 0
  %441 = vmatpush2.bf16.msra.mxu0 0
  %442 = vmatprep.subr.bf16.mxu0 0
  %443 = vmatpush2.bf16.msra.mxu0 0
  %444 = vmatprep.subr.bf16.mxu0 0
  %445 = vmatpush2.bf16.msra.mxu0 0
  %446 = vmatprep.subr.bf16.mxu0 0
  %447 = vmatpush2.bf16.msra.mxu0 0
  %448 = vmatprep.subr.bf16.mxu0 0
  %449 = vmatpush2.bf16.msra.mxu0 0
  %450 = vmatprep.subr.bf16.mxu0 0
  %451 = vmatpush2.bf16.msra.mxu0 0
  %452 = vmatprep.subr.bf16.mxu0 0
  %453 = vmatpush2.bf16.msra.mxu0 0
  %454 = vmatprep.subr.bf16.mxu0 0
  %455 = vmatpush2.bf16.msra.mxu0 0
  %456 = vmatprep.mubr.bf16.mxu0 0
  %457 = vmatmul.mubr.bf16.gmra.mxu0 %v364
  %v458 = vpop.f32.mrf.mxu0
  %v459 = vadd.f32 %v375, %v458
  %v460 = vpop.f32.mrf.mxu0
  %v461 = vpop.f32.mrf.mxu0
  %v462 = vadd.f32 %v375, %v461
  %v463 = vpop.f32.mrf.mxu0
  %464 = vmatprep.mubr.bf16.mxu0 0
  %465 = vmatmul.mubr.bf16.gmra.mxu0 %v365
  %v466 = vpop.f32.mrf.mxu0
  %v467 = vadd.f32 %v375, %v466
  %v468 = vpop.f32.mrf.mxu0
  %v469 = vpop.f32.mrf.mxu0
  %v470 = vadd.f32 %v375, %v469
  %v471 = vpop.f32.mrf.mxu0
  %472 = vmatprep.mubr.bf16.mxu0 0
  %473 = vmatmul.mubr.bf16.gmra.mxu0 %v366
  %v474 = vpop.f32.mrf.mxu0
  %v475 = vadd.f32 %v375, %v474
  %v476 = vpop.f32.mrf.mxu0
  %v477 = vpop.f32.mrf.mxu0
  %v478 = vadd.f32 %v375, %v477
  %v479 = vpop.f32.mrf.mxu0
  %480 = vmatprep.mubr.bf16.mxu0 0
  %481 = vmatmul.mubr.bf16.gmra.mxu0 %v367
  %v482 = vpop.f32.mrf.mxu0
  %v483 = vadd.f32 %v375, %v482
  %v484 = vpop.f32.mrf.mxu0
  %v485 = vpop.f32.mrf.mxu0
  %v486 = vadd.f32 %v375, %v485
  %v487 = vpop.f32.mrf.mxu0
  %488 = vmatprep.mubr.bf16.mxu0 0
  %489 = vmatmul.mubr.bf16.gmra.mxu0 %v368
  %v490 = vpop.f32.mrf.mxu0
  %v491 = vadd.f32 %v375, %v490
  %v492 = vpop.f32.mrf.mxu0
  %v493 = vpop.f32.mrf.mxu0
  %v494 = vadd.f32 %v375, %v493
  %v495 = vpop.f32.mrf.mxu0
  %496 = vmatprep.mubr.bf16.mxu0 0
  %497 = vmatmul.mubr.bf16.gmra.mxu0 %v369
  %v498 = vpop.f32.mrf.mxu0
  %v499 = vadd.f32 %v375, %v498
  %v500 = vpop.f32.mrf.mxu0
  %v501 = vpop.f32.mrf.mxu0
  %v502 = vadd.f32 %v375, %v501
  %v503 = vpop.f32.mrf.mxu0
  %504 = vmatprep.mubr.bf16.mxu0 0
  %505 = vmatmul.mubr.bf16.gmra.mxu0 %v370
  %v506 = vpop.f32.mrf.mxu0
  %v507 = vadd.f32 %v375, %v506
  %v508 = vpop.f32.mrf.mxu0
  %v509 = vpop.f32.mrf.mxu0
  %v510 = vadd.f32 %v375, %v509
  %v511 = vpop.f32.mrf.mxu0
  %512 = vmatprep.mubr.bf16.mxu0 0
  %513 = vmatmul.mubr.bf16.gmra.mxu0 %v371
  %v514 = vpop.f32.mrf.mxu0
  %v515 = vadd.f32 %v375, %v514
  %v516 = vpop.f32.mrf.mxu0
  %v517 = vpop.f32.mrf.mxu0
  %v518 = vadd.f32 %v375, %v517
  %v519 = vpop.f32.mrf.mxu0
  %520 = vdwg.mxu0
  %v521 = vmax.f32 %v459, 0.0
  %v522 = vmax.f32 %v462, 0.0
  %v523 = vmax.f32 %v467, 0.0
  %v524 = vmax.f32 %v470, 0.0
  %v525 = vmax.f32 %v475, 0.0
  %v526 = vmax.f32 %v478, 0.0
  %v527 = vmax.f32 %v483, 0.0
  %v528 = vmax.f32 %v486, 0.0
  %v529 = vmax.f32 %v491, 0.0
  %v530 = vmax.f32 %v494, 0.0
  %v531 = vmax.f32 %v499, 0.0
  %v532 = vmax.f32 %v502, 0.0
  %v533 = vmax.f32 %v507, 0.0
  %v534 = vmax.f32 %v510, 0.0
  %v535 = vmax.f32 %v515, 0.0
  %v536 = vmax.f32 %v518, 0.0
  %v537 = vadd.f32 %v521, %v522
  %v538 = vadd.f32 %v537, %v523
  %v539 = vadd.f32 %v538, %v524
  %v540 = vadd.f32 %v539, %v525
  %v541 = vadd.f32 %v540, %v526
  %v542 = vadd.f32 %v541, %v527
  %v543 = vadd.f32 %v542, %v528
  %v544 = vadd.f32 %v543, %v529
  %v545 = vadd.f32 %v544, %v530
  %v546 = vadd.f32 %v545, %v531
  %v547 = vadd.f32 %v546, %v532
  %v548 = vadd.f32 %v547, %v533
  %v549 = vadd.f32 %v548, %v534
  %v550 = vadd.f32 %v549, %v535
  %v551 = vadd.f32 %v550, %v536
  %v552 = vrot.slane %v551, 4
  %v553 = vadd.f32 %v551, %v552
  %v554 = vrot.slane %v553, 2
  %v555 = vadd.f32 %v553, %v554
  %v556 = vrot.slane %v555, 1
  %v557 = vadd.f32 %v555, %v556
  %v558 = vmul.f32 %v557, %v249
  %v559 = vsub.f32 %v521, %v558
  %v560 = vsub.f32 %v522, %v558
  %v561 = vsub.f32 %v523, %v558
  %v562 = vsub.f32 %v524, %v558
  %v563 = vsub.f32 %v525, %v558
  %v564 = vsub.f32 %v526, %v558
  %v565 = vsub.f32 %v527, %v558
  %v566 = vsub.f32 %v528, %v558
  %v567 = vsub.f32 %v529, %v558
  %v568 = vsub.f32 %v530, %v558
  %v569 = vsub.f32 %v531, %v558
  %v570 = vsub.f32 %v532, %v558
  %v571 = vsub.f32 %v533, %v558
  %v572 = vsub.f32 %v534, %v558
  %v573 = vsub.f32 %v535, %v558
  %v574 = vsub.f32 %v536, %v558
  %v575 = vmul.f32 %v559, %v559
  %v576 = vmul.f32 %v560, %v560
  %v577 = vmul.f32 %v561, %v561
  %v578 = vmul.f32 %v562, %v562
  %v579 = vmul.f32 %v563, %v563
  %v580 = vmul.f32 %v564, %v564
  %v581 = vmul.f32 %v565, %v565
  %v582 = vmul.f32 %v566, %v566
  %v583 = vmul.f32 %v567, %v567
  %v584 = vmul.f32 %v568, %v568
  %v585 = vmul.f32 %v569, %v569
  %v586 = vmul.f32 %v570, %v570
  %v587 = vmul.f32 %v571, %v571
  %v588 = vmul.f32 %v572, %v572
  %v589 = vmul.f32 %v573, %v573
  %v590 = vmul.f32 %v574, %v574
  %v591 = vadd.f32 %v575, %v576
  %v592 = vadd.f32 %v591, %v577
  %v593 = vadd.f32 %v592, %v578
  %v594 = vadd.f32 %v593, %v579
  %v595 = vadd.f32 %v594, %v580
  %v596 = vadd.f32 %v595, %v581
  %v597 = vadd.f32 %v596, %v582
  %v598 = vadd.f32 %v597, %v583
  %v599 = vadd.f32 %v598, %v584
  %v600 = vadd.f32 %v599, %v585
  %v601 = vadd.f32 %v600, %v586
  %v602 = vadd.f32 %v601, %v587
  %v603 = vadd.f32 %v602, %v588
  %v604 = vadd.f32 %v603, %v589
  %v605 = vadd.f32 %v604, %v590
  %v606 = vrot.slane %v605, 4
  %v607 = vadd.f32 %v605, %v606
  %v608 = vrot.slane %v607, 2
  %v609 = vadd.f32 %v607, %v608
  %v610 = vrot.slane %v609, 1
  %v611 = vadd.f32 %v609, %v610
  %v612 = vmul.f32 %v611, %v249
  %v613 = vadd.f32 %v612, 1e-05
  %v614 = vrsqrt.pop %v613
  %v615 = vmul.f32 %v37, %v614
  %v616 = vlaneseq
  %v617 = vshrl.u32 %v616, 7
  %v618 = vsub.s32 4, %v617
  %v619 = vrot.slane %v615, %v618
  %v620 = vmul.f32 %v559, %v619
  %v621 = vmul.f32 %v560, %v619
  %v622 = vmul.f32 %v561, %v619
  %v623 = vmul.f32 %v562, %v619
  %v624 = vmul.f32 %v563, %v619
  %v625 = vmul.f32 %v564, %v619
  %v626 = vmul.f32 %v565, %v619
  %v627 = vmul.f32 %v566, %v619
  %v628 = vmul.f32 %v567, %v619
  %v629 = vmul.f32 %v568, %v619
  %v630 = vmul.f32 %v569, %v619
  %v631 = vmul.f32 %v570, %v619
  %v632 = vmul.f32 %v571, %v619
  %v633 = vmul.f32 %v572, %v619
  %v634 = vmul.f32 %v573, %v619
  %v635 = vmul.f32 %v574, %v619
  %v636 = vlaneseq
  %v637 = vshrl.u32 %v636, 7
  %v638 = vsub.s32 5, %v637
  %v639 = vrot.slane %v37, %v638
  %v640 = vadd.f32 %v620, %v639
  %v641 = vadd.f32 %v621, %v639
  %v642 = vadd.f32 %v622, %v639
  %v643 = vadd.f32 %v623, %v639
  %v644 = vadd.f32 %v624, %v639
  %v645 = vadd.f32 %v625, %v639
  %v646 = vadd.f32 %v626, %v639
  %v647 = vadd.f32 %v627, %v639
  %v648 = vadd.f32 %v628, %v639
  %v649 = vadd.f32 %v629, %v639
  %v650 = vadd.f32 %v630, %v639
  %v651 = vadd.f32 %v631, %v639
  %v652 = vadd.f32 %v632, %v639
  %v653 = vadd.f32 %v633, %v639
  %v654 = vadd.f32 %v634, %v639
  %v655 = vadd.f32 %v635, %v639
  %v656 = vld [vmem:[%s3] sm:$0xf]
  %v657 = vld [vmem:[%s3 + $0x4] sm:$0xf]
  %v658 = vld [vmem:[%s3 + $0x8] sm:$0xf]
  %v659 = vld [vmem:[%s3 + $0xc] sm:$0xf]
  %v660 = vld [vmem:[%s3 + $0x10] sm:$0xf]
  %v661 = vld [vmem:[%s3 + $0x14] sm:$0xf]
  %v662 = vld [vmem:[%s3 + $0x18] sm:$0xf]
  %v663 = vld [vmem:[%s3 + $0x1c] sm:$0xf]
  %v664 = vld [vmem:[%s3 + $0x20] sm:$0xf]
  %v665 = vld [vmem:[%s3 + $0x24] sm:$0xf]
  %v666 = vld [vmem:[%s3 + $0x28] sm:$0xf]
  %v667 = vld [vmem:[%s3 + $0x2c] sm:$0xf]
  %v668 = vld [vmem:[%s3 + $0x30] sm:$0xf]
  %v669 = vld [vmem:[%s3 + $0x34] sm:$0xf]
  %v670 = vld [vmem:[%s3 + $0x38] sm:$0xf]
  %v671 = vld [vmem:[%s3 + $0x3c] sm:$0xf]
  %v672 = vadd.f32 %v640, %v641
  %v673 = vadd.f32 %v672, %v642
  %v674 = vadd.f32 %v673, %v643
  %v675 = vadd.f32 %v674, %v644
  %v676 = vadd.f32 %v675, %v645
  %v677 = vadd.f32 %v676, %v646
  %v678 = vadd.f32 %v677, %v647
  %v679 = vadd.f32 %v678, %v648
  %v680 = vadd.f32 %v679, %v649
  %v681 = vadd.f32 %v680, %v650
  %v682 = vadd.f32 %v681, %v651
  %v683 = vadd.f32 %v682, %v652
  %v684 = vadd.f32 %v683, %v653
  %v685 = vadd.f32 %v684, %v654
  %v686 = vadd.f32 %v685, %v655
  %v687 = vrot.slane %v686, 4
  %v688 = vadd.f32 %v686, %v687
  %v689 = vrot.slane %v688, 2
  %v690 = vadd.f32 %v688, %v689
  %v691 = vrot.slane %v690, 1
  %v692 = vadd.f32 %v690, %v691
  %v693 = vmul.f32 %v692, %v249
  %v694 = vsub.f32 %v640, %v693
  %v695 = vsub.f32 %v641, %v693
  %v696 = vsub.f32 %v642, %v693
  %v697 = vsub.f32 %v643, %v693
  %v698 = vsub.f32 %v644, %v693
  %v699 = vsub.f32 %v645, %v693
  %v700 = vsub.f32 %v646, %v693
  %v701 = vsub.f32 %v647, %v693
  %v702 = vsub.f32 %v648, %v693
  %v703 = vsub.f32 %v649, %v693
  %v704 = vsub.f32 %v650, %v693
  %v705 = vsub.f32 %v651, %v693
  %v706 = vsub.f32 %v652, %v693
  %v707 = vsub.f32 %v653, %v693
  %v708 = vsub.f32 %v654, %v693
  %v709 = vsub.f32 %v655, %v693
  %v710 = vmul.f32 %v694, %v694
  %v711 = vmul.f32 %v695, %v695
  %v712 = vmul.f32 %v696, %v696
  %v713 = vmul.f32 %v697, %v697
  %v714 = vmul.f32 %v698, %v698
  %v715 = vmul.f32 %v699, %v699
  %v716 = vmul.f32 %v700, %v700
  %v717 = vmul.f32 %v701, %v701
  %v718 = vmul.f32 %v702, %v702
  %v719 = vmul.f32 %v703, %v703
  %v720 = vmul.f32 %v704, %v704
  %v721 = vmul.f32 %v705, %v705
  %v722 = vmul.f32 %v706, %v706
  %v723 = vmul.f32 %v707, %v707
  %v724 = vmul.f32 %v708, %v708
  %v725 = vmul.f32 %v709, %v709
  %v726 = vadd.f32 %v710, %v711
  %v727 = vadd.f32 %v726, %v712
  %v728 = vadd.f32 %v727, %v713
  %v729 = vadd.f32 %v728, %v714
  %v730 = vadd.f32 %v729, %v715
  %v731 = vadd.f32 %v730, %v716
  %v732 = vadd.f32 %v731, %v717
  %v733 = vadd.f32 %v732, %v718
  %v734 = vadd.f32 %v733, %v719
  %v735 = vadd.f32 %v734, %v720
  %v736 = vadd.f32 %v735, %v721
  %v737 = vadd.f32 %v736, %v722
  %v738 = vadd.f32 %v737, %v723
  %v739 = vadd.f32 %v738, %v724
  %v740 = vadd.f32 %v739, %v725
  %v741 = vrot.slane %v740, 4
  %v742 = vadd.f32 %v740, %v741
  %v743 = vrot.slane %v742, 2
  %v744 = vadd.f32 %v742, %v743
  %v745 = vrot.slane %v744, 1
  %v746 = vadd.f32 %v744, %v745
  %v747 = vmul.f32 %v746, %v249
  %v748 = vadd.f32 %v747, 1e-05
  %v749 = vrsqrt.pop %v748
  %v750 = vmul.f32 %v37, %v749
  %v751 = vlaneseq
  %v752 = vshrl.u32 %v751, 7
  %v753 = vsub.s32 7, %v752
  %v754 = vrot.slane %v750, %v753
  %v755 = vmul.f32 %v694, %v754
  %v756 = vmul.f32 %v695, %v754
  %v757 = vmul.f32 %v696, %v754
  %v758 = vmul.f32 %v697, %v754
  %v759 = vmul.f32 %v698, %v754
  %v760 = vmul.f32 %v699, %v754
  %v761 = vmul.f32 %v700, %v754
  %v762 = vmul.f32 %v701, %v754
  %v763 = vmul.f32 %v702, %v754
  %v764 = vmul.f32 %v703, %v754
  %v765 = vmul.f32 %v704, %v754
  %v766 = vmul.f32 %v705, %v754
  %v767 = vmul.f32 %v706, %v754
  %v768 = vmul.f32 %v707, %v754
  %v769 = vmul.f32 %v708, %v754
  %v770 = vmul.f32 %v709, %v754
  %v771 = vlaneseq
  %v772 = vshrl.u32 %v771, 7
  %v773 = vsub.s32 0, %v772
  %v774 = vrot.slane %v38, %v773
  %v775 = vadd.f32 %v755, %v774
  %v776 = vadd.f32 %v756, %v774
  %v777 = vadd.f32 %v757, %v774
  %v778 = vadd.f32 %v758, %v774
  %v779 = vadd.f32 %v759, %v774
  %v780 = vadd.f32 %v760, %v774
  %v781 = vadd.f32 %v761, %v774
  %v782 = vadd.f32 %v762, %v774
  %v783 = vadd.f32 %v763, %v774
  %v784 = vadd.f32 %v764, %v774
  %v785 = vadd.f32 %v765, %v774
  %v786 = vadd.f32 %v766, %v774
  %v787 = vadd.f32 %v767, %v774
  %v788 = vadd.f32 %v768, %v774
  %v789 = vadd.f32 %v769, %v774
  %v790 = vadd.f32 %v770, %v774
  %v791 = vpack.c.bf16 %v776, %v775
  %v792 = vpack.c.bf16 %v778, %v777
  %v793 = vpack.c.bf16 %v780, %v779
  %v794 = vpack.c.bf16 %v782, %v781
  %v795 = vpack.c.bf16 %v784, %v783
  %v796 = vpack.c.bf16 %v786, %v785
  %v797 = vpack.c.bf16 %v788, %v787
  %v798 = vpack.c.bf16 %v790, %v789
  %v799 = vlaneseq
  %v800 = vshrl.u32 %v799, 7
  %v801 = vsub.s32 6, %v800
  %v802 = vrot.slane %v37, %v801
  %v819 = vunpack.c.l.b16 %v656
  %v820 = vunpack.c.l.b16 %v657
  %v821 = vunpack.c.l.b16 %v658
  %v822 = vunpack.c.l.b16 %v659
  %v823 = vunpack.c.l.b16 %v660
  %v824 = vunpack.c.l.b16 %v661
  %v825 = vunpack.c.l.b16 %v662
  %v826 = vunpack.c.l.b16 %v663
  %v827 = vunpack.c.l.b16 %v664
  %v828 = vunpack.c.l.b16 %v665
  %v829 = vunpack.c.l.b16 %v666
  %v830 = vunpack.c.l.b16 %v667
  %v831 = vunpack.c.l.b16 %v668
  %v832 = vunpack.c.l.b16 %v669
  %v833 = vunpack.c.l.b16 %v670
  %v834 = vunpack.c.l.b16 %v671
  %v835 = vpack.c.b16 %v820, %v819
  %v836 = vpack.c.b16 %v822, %v821
  %v837 = vpack.c.b16 %v824, %v823
  %v838 = vpack.c.b16 %v826, %v825
  %v839 = vpack.c.b16 %v828, %v827
  %v840 = vpack.c.b16 %v830, %v829
  %v841 = vpack.c.b16 %v832, %v831
  %v842 = vpack.c.b16 %v834, %v833
  %851 = vmatprep.subr.bf16.mxu0 0
  %852 = vmatpush1.bf16.msra.mxu0 %v842
  %853 = vmatprep.subr.bf16.mxu0 0
  %854 = vmatpush1.bf16.msra.mxu0 %v841
  %855 = vmatprep.subr.bf16.mxu0 0
  %856 = vmatpush1.bf16.msra.mxu0 %v840
  %857 = vmatprep.subr.bf16.mxu0 0
  %858 = vmatpush1.bf16.msra.mxu0 %v839
  %859 = vmatprep.subr.bf16.mxu0 0
  %860 = vmatpush1.bf16.msra.mxu0 %v838
  %861 = vmatprep.subr.bf16.mxu0 0
  %862 = vmatpush1.bf16.msra.mxu0 %v837
  %863 = vmatprep.subr.bf16.mxu0 0
  %864 = vmatpush1.bf16.msra.mxu0 %v836
  %865 = vmatprep.subr.bf16.mxu0 0
  %866 = vmatpush1.bf16.msra.mxu0 %v835
  %867 = vmatprep.subr.bf16.mxu0 0
  %868 = vmatpush2.bf16.msra.mxu0 0
  %869 = vmatprep.subr.bf16.mxu0 0
  %870 = vmatpush2.bf16.msra.mxu0 0
  %871 = vmatprep.subr.bf16.mxu0 0
  %872 = vmatpush2.bf16.msra.mxu0 0
  %873 = vmatprep.subr.bf16.mxu0 0
  %874 = vmatpush2.bf16.msra.mxu0 0
  %875 = vmatprep.subr.bf16.mxu0 0
  %876 = vmatpush2.bf16.msra.mxu0 0
  %877 = vmatprep.subr.bf16.mxu0 0
  %878 = vmatpush2.bf16.msra.mxu0 0
  %879 = vmatprep.subr.bf16.mxu0 0
  %880 = vmatpush2.bf16.msra.mxu0 0
  %881 = vmatprep.subr.bf16.mxu0 0
  %882 = vmatpush2.bf16.msra.mxu0 0
  %883 = vmatprep.mubr.bf16.mxu0 0
  %884 = vmatmul.mubr.bf16.gmra.mxu0 %v791
  %v885 = vpop.f32.mrf.mxu0
  %v886 = vadd.f32 %v802, %v885
  %v887 = vpop.f32.mrf.mxu0
  %v888 = vpop.f32.mrf.mxu0
  %v889 = vadd.f32 %v802, %v888
  %v890 = vpop.f32.mrf.mxu0
  %891 = vmatprep.mubr.bf16.mxu0 0
  %892 = vmatmul.mubr.bf16.gmra.mxu0 %v792
  %v893 = vpop.f32.mrf.mxu0
  %v894 = vadd.f32 %v802, %v893
  %v895 = vpop.f32.mrf.mxu0
  %v896 = vpop.f32.mrf.mxu0
  %v897 = vadd.f32 %v802, %v896
  %v898 = vpop.f32.mrf.mxu0
  %899 = vmatprep.mubr.bf16.mxu0 0
  %900 = vmatmul.mubr.bf16.gmra.mxu0 %v793
  %v901 = vpop.f32.mrf.mxu0
  %v902 = vadd.f32 %v802, %v901
  %v903 = vpop.f32.mrf.mxu0
  %v904 = vpop.f32.mrf.mxu0
  %v905 = vadd.f32 %v802, %v904
  %v906 = vpop.f32.mrf.mxu0
  %907 = vmatprep.mubr.bf16.mxu0 0
  %908 = vmatmul.mubr.bf16.gmra.mxu0 %v794
  %v909 = vpop.f32.mrf.mxu0
  %v910 = vadd.f32 %v802, %v909
  %v911 = vpop.f32.mrf.mxu0
  %v912 = vpop.f32.mrf.mxu0
  %v913 = vadd.f32 %v802, %v912
  %v914 = vpop.f32.mrf.mxu0
  %915 = vmatprep.mubr.bf16.mxu0 0
  %916 = vmatmul.mubr.bf16.gmra.mxu0 %v795
  %v917 = vpop.f32.mrf.mxu0
  %v918 = vadd.f32 %v802, %v917
  %v919 = vpop.f32.mrf.mxu0
  %v920 = vpop.f32.mrf.mxu0
  %v921 = vadd.f32 %v802, %v920
  %v922 = vpop.f32.mrf.mxu0
  %923 = vmatprep.mubr.bf16.mxu0 0
  %924 = vmatmul.mubr.bf16.gmra.mxu0 %v796
  %v925 = vpop.f32.mrf.mxu0
  %v926 = vadd.f32 %v802, %v925
  %v927 = vpop.f32.mrf.mxu0
  %v928 = vpop.f32.mrf.mxu0
  %v929 = vadd.f32 %v802, %v928
  %v930 = vpop.f32.mrf.mxu0
  %931 = vmatprep.mubr.bf16.mxu0 0
  %932 = vmatmul.mubr.bf16.gmra.mxu0 %v797
  %v933 = vpop.f32.mrf.mxu0
  %v934 = vadd.f32 %v802, %v933
  %v935 = vpop.f32.mrf.mxu0
  %v936 = vpop.f32.mrf.mxu0
  %v937 = vadd.f32 %v802, %v936
  %v938 = vpop.f32.mrf.mxu0
  %939 = vmatprep.mubr.bf16.mxu0 0
  %940 = vmatmul.mubr.bf16.gmra.mxu0 %v798
  %v941 = vpop.f32.mrf.mxu0
  %v942 = vadd.f32 %v802, %v941
  %v943 = vpop.f32.mrf.mxu0
  %v944 = vpop.f32.mrf.mxu0
  %v945 = vadd.f32 %v802, %v944
  %v946 = vpop.f32.mrf.mxu0
  %947 = vdwg.mxu0
  %948 = vst [vmem:[%s5] sm:$0xff] %v886
  %949 = vst [vmem:[%s5 + $0x8] sm:$0xff] %v889
  %950 = vst [vmem:[%s5 + $0x10] sm:$0xff] %v894
  %951 = vst [vmem:[%s5 + $0x18] sm:$0xff] %v897
  %952 = vst [vmem:[%s5 + $0x20] sm:$0xff] %v902
  %953 = vst [vmem:[%s5 + $0x28] sm:$0xff] %v905
  %954 = vst [vmem:[%s5 + $0x30] sm:$0xff] %v910
  %955 = vst [vmem:[%s5 + $0x38] sm:$0xff] %v913
  %956 = vst [vmem:[%s5 + $0x40] sm:$0xff] %v918
  %957 = vst [vmem:[%s5 + $0x48] sm:$0xff] %v921
  %958 = vst [vmem:[%s5 + $0x50] sm:$0xff] %v926
  %959 = vst [vmem:[%s5 + $0x58] sm:$0xff] %v929
  %960 = vst [vmem:[%s5 + $0x60] sm:$0xff] %v934
  %961 = vst [vmem:[%s5 + $0x68] sm:$0xff] %v937
  %962 = vst [vmem:[%s5 + $0x70] sm:$0xff] %v942
  %963 = vst [vmem:[%s5 + $0x78] sm:$0xff] %v945
  // Predicated region
  $region22: #{forward.1} parent=0 // pred_check
    _
  $region23: #{forward.1} parent=0 // pred_check_branch
    %965 = sbr.rel (0) target = $region25
  $region24: #{forward.1} parent=0 // pred_region
    _
  $region25: #{forward.1} parent=0 // pred_fallthru
    _
  // Predicated region
  $region26: #{forward.1} parent=0 // pred_check
    _
  $region27: #{forward.1} parent=0 // pred_check_branch
    %967 = sbr.rel (0) target = $region29
  $region28: #{forward.1} parent=0 // pred_region
    _
  $region29: #{forward.1} parent=0 // pred_fallthru
    _

</llo_original>
